<compile_context>
chip_gen: v5e
topology: v5e:2x2
jax: 0.10.0
libtpu: 0.0.40
codegen_flags: <defaults>
</compile_context>

<pallas_src>
import jax
import jax.numpy as jnp
from jax.experimental import pallas as pl
from jax.experimental.pallas import tpu as pltpu

# ---------------------------------------------------------------------------
# problem sizes (small, consistent with the module)
# ---------------------------------------------------------------------------
B = 2          # batch (graphs)
N = 16         # nodes per graph
C_IN = 16      # in_channels
H = 32         # hidden_channels
C_OUT = 32     # out_channels
BN_EPS = 1e-5

BN_ROWS = B * N                      # 32 rows everywhere
assert H == C_OUT and BN_ROWS == 32 and 2 * C_IN == 32

# ---- data slab layout: (DATA_ROWS, 128) f32 ------------------------------
#   rows 0:32,  lanes  0:32          -> pre-normalized block-diagonal adjacency
#   rows 0:32,  lanes 32:32+C_IN     -> x0 (flattened node features)
#   rows 32:42, lanes  0:H           -> 10 param rows: b1,g1,be1, b2,g2,be2,
#                                                      b3,g3,be3, blin
X_LANE = BN_ROWS
P_ROW = BN_ROWS
N_PROWS = 10
DATA_ROWS = ((P_ROW + N_PROWS + 7) // 8) * 8          # 48

# ---- weight slab layout: (64, 128) bf16, four 32-lane groups --------------
#   lanes   0: 32, rows  0:64 -> fused conv2 [W_rel; W_root]   (64, 32)
#   lanes  32: 64, rows  0:64 -> fused conv3 [W_rel; W_root]   (64, 32)
#   lanes  64: 96, rows  0:32 -> fused conv1 [W_rel; W_root]   (32, 32)
#   lanes  64: 96, rows 32:64 -> Wlin rows  0:32 (x1 slice)    (32, 32)
#   lanes  96:128, rows  0:64 -> Wlin rows 32:96 (x2,x3 slices)(64, 32)
W_ROWS = 64


def gnn_kernel(d_ref, w_ref, out_ref):
    d = d_ref[...]                                        # (48, 128) f32
    w = w_ref[...]                                        # (64, 128) bf16

    # unpack the data slab (static slices; rides the mostly-idle XLU slot)
    adj = d[0:BN_ROWS, 0:BN_ROWS].astype(jnp.bfloat16)    # normalized block-diag
    x0 = d[0:BN_ROWS, X_LANE:X_LANE + C_IN].astype(jnp.bfloat16)

    def prow(i):                                          # (1, H) f32 param row
        return d[P_ROW + i:P_ROW + i + 1, 0:H]

    # unpack the weight slab
    w1f = w[0:32, 64:96]                                  # (2*C_IN, H)
    w2f = w[:, 0:32]                                      # (2*H,   H)
    w3f = w[:, 32:64]                                     # (2*H,   C_OUT)
    wlin = jnp.concatenate([w[32:64, 64:96], w[:, 96:128]], axis=0)   # (96, C_OUT)

    inv_rows = 1.0 / BN_ROWS

    def layer(h_bf, w_fused, bias, gamma, beta):
        """Fused DenseSAGEConv + ReLU + training-mode BatchNorm."""
        # neighbour aggregation: single flat matmul, 1/deg already folded in
        agg = jnp.dot(adj, h_bf, preferred_element_type=jnp.float32)
        # fused [agg | h] @ [W_rel ; W_root] : one MXU matmul, K = 2c
        z = jnp.concatenate([agg.astype(jnp.bfloat16), h_bf], axis=-1)
        o = jnp.dot(z, w_fused, preferred_element_type=jnp.float32) + bias
        o = jnp.maximum(o, 0.0)                           # ReLU (f32)
        # BatchNorm1d training stats: ONE axis-0 reduction over [o | o*o]
        s = jnp.sum(jnp.concatenate([o, o * o], axis=-1), axis=0,
                    keepdims=True) * inv_rows             # (1, 2H)
        mu = s[:, 0:H]
        var = s[:, H:2 * H] - mu * mu                     # biased variance
        return (o - mu) * jax.lax.rsqrt(var + BN_EPS) * gamma + beta

    x1 = layer(x0, w1f, prow(0), prow(1), prow(2))
    x1b = x1.astype(jnp.bfloat16)
    x2 = layer(x1b, w2f, prow(3), prow(4), prow(5))
    x2b = x2.astype(jnp.bfloat16)
    x3 = layer(x2b, w3f, prow(6), prow(7), prow(8))
    x3b = x3.astype(jnp.bfloat16)

    # relu(Linear(concat([x1,x2,x3], -1))) as a single K=96 MXU matmul
    xcat = jnp.concatenate([x1b, x2b, x3b], axis=-1)      # (32, 96) bf16
    y = jnp.dot(xcat, wlin, preferred_element_type=jnp.float32) + prow(9)
    y = jnp.maximum(y, 0.0)                               # (32, 32) f32

    # lane-dense (8, 128) store: column-block layout, unpacked in the wrapper
    out_ref[...] = jnp.concatenate(
        [y[0:8], y[8:16], y[16:24], y[24:32]], axis=-1)


def _pack_data_slab(x, adj, p_rows):
    """adj normalization + block-diag fold + x + params -> one dense f32 slab."""
    deg = jnp.maximum(jnp.sum(adj, axis=-1, keepdims=True), 1.0)
    adj_n = adj / deg                                     # fold 1/deg in f32
    eye = jnp.eye(B, dtype=adj.dtype)
    adj_bd = (eye[:, None, :, None] * adj_n[:, :, None, :]
              ).reshape(BN_ROWS, BN_ROWS)                 # block-diagonal

    data = jnp.zeros((DATA_ROWS, 128), jnp.float32)
    data = data.at[0:BN_ROWS, 0:BN_ROWS].set(adj_bd)
    data = data.at[0:BN_ROWS, X_LANE:X_LANE + C_IN].set(x.reshape(BN_ROWS, C_IN))
    data = data.at[P_ROW:P_ROW + N_PROWS, 0:H].set(p_rows)
    return data


@jax.jit
def gnn_forward(x, adj, w_slab, p_rows):
    data = _pack_data_slab(x, adj, p_rows)
    vmem = pl.BlockSpec(memory_space=pltpu.MemorySpace.VMEM)
    slab = pl.pallas_call(
        gnn_kernel,
        out_shape=jax.ShapeDtypeStruct((8, 128), jnp.float32),
        in_specs=[vmem, vmem],
        out_specs=vmem,
    )(data, w_slab)
    # undo the column-block layout: (8,128) -> (32,32) -> (B,N,C_OUT)
    out = jnp.concatenate([slab[:, 32 * j:32 * (j + 1)] for j in range(4)],
                          axis=0)
    return out.reshape(B, N, C_OUT)


# ---------------------------------------------------------------------------
# parameters (raw f32 for the reference, packed slabs for the kernel)
# ---------------------------------------------------------------------------
def init_params(key):
    def lin_w(k, fan_in, fan_out):
        return (jax.random.normal(k, (fan_in, fan_out), jnp.float32)
                / jnp.sqrt(jnp.float32(fan_in)))

    ks = jax.random.split(key, 11)
    return dict(
        w1_rel=lin_w(ks[0], C_IN, H), w1_root=lin_w(ks[1], C_IN, H),
        w2_rel=lin_w(ks[2], H, H),    w2_root=lin_w(ks[3], H, H),
        w3_rel=lin_w(ks[4], H, C_OUT), w3_root=lin_w(ks[5], H, C_OUT),
        wlin=lin_w(ks[6], 2 * H + C_OUT, C_OUT),
        b1=0.1 * jax.random.normal(ks[7], (H,), jnp.float32),
        b2=0.1 * jax.random.normal(ks[8], (H,), jnp.float32),
        b3=0.1 * jax.random.normal(ks[9], (C_OUT,), jnp.float32),
        blin=0.1 * jax.random.normal(ks[10], (C_OUT,), jnp.float32),
        g1=jnp.ones((H,), jnp.float32),  be1=jnp.zeros((H,), jnp.float32),
        g2=jnp.ones((H,), jnp.float32),  be2=jnp.zeros((H,), jnp.float32),
        g3=jnp.ones((C_OUT,), jnp.float32), be3=jnp.zeros((C_OUT,), jnp.float32),
    )


def pack_params(p):
    w1 = jnp.concatenate([p['w1_rel'], p['w1_root']], 0)      # (32, 32)
    w2 = jnp.concatenate([p['w2_rel'], p['w2_root']], 0)      # (64, 32)
    w3 = jnp.concatenate([p['w3_rel'], p['w3_root']], 0)      # (64, 32)
    wlin = p['wlin']                                          # (96, 32)
    col0 = w2
    col1 = w3
    col2 = jnp.concatenate([w1, wlin[0:32]], 0)               # (64, 32)
    col3 = wlin[32:96]                                        # (64, 32)
    w_slab = jnp.concatenate([col0, col1, col2, col3],
                             axis=1).astype(jnp.bfloat16)     # (64, 128)
    assert w_slab.shape == (W_ROWS, 128)

    p_rows = jnp.stack([p['b1'], p['g1'], p['be1'],
                        p['b2'], p['g2'], p['be2'],
                        p['b3'], p['g3'], p['be3'],
                        p['blin']], axis=0).astype(jnp.float32)   # (10, 32)
    return w_slab, p_rows


def reference_forward(x, adj, p):
    """Pure-JAX f32 reference mirroring the torch module (training-mode BN)."""
    deg = jnp.maximum(jnp.sum(adj, axis=-1, keepdims=True), 1.0)

    def conv(h, wr, wroot, b):
        agg = jnp.einsum('bij,bjc->bic', adj, h) / deg
        return agg @ wr + h @ wroot + b

    def bn(h, gamma, beta):
        hf = h.reshape(-1, h.shape[-1])
        mu = jnp.mean(hf, axis=0)
        var = jnp.mean((hf - mu) ** 2, axis=0)
        out = (hf - mu) * jax.lax.rsqrt(var + BN_EPS) * gamma + beta
        return out.reshape(h.shape)

    x1 = bn(jax.nn.relu(conv(x, p['w1_rel'], p['w1_root'], p['b1'])), p['g1'], p['be1'])
    x2 = bn(jax.nn.relu(conv(x1, p['w2_rel'], p['w2_root'], p['b2'])), p['g2'], p['be2'])
    x3 = bn(jax.nn.relu(conv(x2, p['w3_rel'], p['w3_root'], p['b3'])), p['g3'], p['be3'])
    xcat = jnp.concatenate([x1, x2, x3], axis=-1)
    return jax.nn.relu(xcat @ p['wlin'] + p['blin'])


if __name__ == "__main__":
    key = jax.random.PRNGKey(0)
    kx, kadj, kp = jax.random.split(key, 3)

    # node features (B, N, C_in)
    x = jax.random.normal(kx, (B, N, C_IN), jnp.float32)
    # dense symmetric 0/1 adjacency (B, N, N)
    a = (jax.random.uniform(kadj, (B, N, N)) < 0.3).astype(jnp.float32)
    adj = jnp.maximum(a, jnp.swapaxes(a, 1, 2))

    params = init_params(kp)
    w_slab, p_rows = pack_params(params)

    out = gnn_forward(x, adj, w_slab, p_rows)
    jax.block_until_ready(out)
    assert out.shape == (B, N, C_OUT)

    # sanity check vs. f32 reference (loose tolerance: bf16 MXU operands and
    # 1/deg folded into a bf16 adjacency intentionally deviate from f32 torch)
    ref = reference_forward(x, adj, params)
    rel_err = jnp.linalg.norm(out - ref) / (jnp.linalg.norm(ref) + 1e-6)
    assert float(rel_err) < 0.1, f"relative error too large: {float(rel_err)}"

    print("KERNEL_OK")
</pallas_src>

<mosaic_0001>
module attributes {stable_mosaic.version = 11 : i64} {
  func.func @gnn_kernel(%arg0: memref<48x128xf32, #tpu.memory_space<vmem>>, %arg1: memref<64x128xbf16, #tpu.memory_space<vmem>>, %arg2: memref<8x128xf32, #tpu.memory_space<vmem>>) attributes {dimension_semantics = [], scalar_prefetch = 0 : i64, scratch_operands = 0 : i64, tpu.core_type = #tpu.core_type<tc>} {
    %c0 = arith.constant 0 : index
    %c0_0 = arith.constant 0 : index
    %0 = vector.load %arg0[%c0, %c0_0] : memref<48x128xf32, #tpu.memory_space<vmem>>, vector<48x128xf32>
    %c0_1 = arith.constant 0 : index
    %c0_2 = arith.constant 0 : index
    %1 = vector.load %arg1[%c0_1, %c0_2] : memref<64x128xbf16, #tpu.memory_space<vmem>>, vector<64x128xbf16>
    %2 = vector.extract_strided_slice %0 {offsets = [0, 0], sizes = [32, 32], strides = [1, 1]} : vector<48x128xf32> to vector<32x32xf32>
    %3 = arith.truncf %2 : vector<32x32xf32> to vector<32x32xbf16>
    %4 = vector.extract_strided_slice %0 {offsets = [0, 32], sizes = [32, 16], strides = [1, 1]} : vector<48x128xf32> to vector<32x16xf32>
    %5 = arith.truncf %4 : vector<32x16xf32> to vector<32x16xbf16>
    %6 = vector.extract_strided_slice %1 {offsets = [0, 64], sizes = [32, 32], strides = [1, 1]} : vector<64x128xbf16> to vector<32x32xbf16>
    %7 = vector.extract_strided_slice %1 {offsets = [0, 0], sizes = [64, 32], strides = [1, 1]} : vector<64x128xbf16> to vector<64x32xbf16>
    %8 = vector.extract_strided_slice %1 {offsets = [0, 32], sizes = [64, 32], strides = [1, 1]} : vector<64x128xbf16> to vector<64x32xbf16>
    %9 = vector.extract_strided_slice %1 {offsets = [32, 64], sizes = [32, 32], strides = [1, 1]} : vector<64x128xbf16> to vector<32x32xbf16>
    %10 = vector.extract_strided_slice %1 {offsets = [0, 96], sizes = [64, 32], strides = [1, 1]} : vector<64x128xbf16> to vector<64x32xbf16>
    %11 = tpu.concatenate %9, %10 in 0 : vector<32x32xbf16>, vector<64x32xbf16> -> vector<96x32xbf16>
    %12 = vector.extract_strided_slice %0 {offsets = [32, 0], sizes = [1, 32], strides = [1, 1]} : vector<48x128xf32> to vector<1x32xf32>
    %13 = vector.extract_strided_slice %0 {offsets = [33, 0], sizes = [1, 32], strides = [1, 1]} : vector<48x128xf32> to vector<1x32xf32>
    %14 = vector.extract_strided_slice %0 {offsets = [34, 0], sizes = [1, 32], strides = [1, 1]} : vector<48x128xf32> to vector<1x32xf32>
    %cst = arith.constant dense<0.000000e+00> : vector<32x16xf32>
    %15 = tpu.matmul %3, %5, %cst {dimension_numbers = #tpu.dot_dimension_numbers<[1], [0], [0], [1], [0, 0, 1, 1], [], []>} : vector<32x32xbf16>, vector<32x16xbf16>, vector<32x16xf32> -> vector<32x16xf32>
    %16 = arith.truncf %15 : vector<32x16xf32> to vector<32x16xbf16>
    %17 = tpu.concatenate %16, %5 in 1 : vector<32x16xbf16>, vector<32x16xbf16> -> vector<32x32xbf16>
    %cst_3 = arith.constant dense<0.000000e+00> : vector<32x32xf32>
    %18 = tpu.matmul %17, %6, %cst_3 {dimension_numbers = #tpu.dot_dimension_numbers<[1], [0], [0], [1], [0, 0, 1, 1], [], []>} : vector<32x32xbf16>, vector<32x32xbf16>, vector<32x32xf32> -> vector<32x32xf32>
    %19 = vector.broadcast %12 : vector<1x32xf32> to vector<32x32xf32>
    %20 = arith.addf %18, %19 : vector<32x32xf32>
    %cst_4 = arith.constant 0.000000e+00 : f32
    %21 = vector.broadcast %cst_4 : f32 to vector<32x32xf32>
    %22 = arith.maximumf %20, %21 : vector<32x32xf32>
    %23 = arith.mulf %22, %22 : vector<32x32xf32>
    %24 = tpu.concatenate %22, %23 in 1 : vector<32x32xf32>, vector<32x32xf32> -> vector<32x64xf32>
    %cst_5 = arith.constant dense<0.000000e+00> : vector<64xf32>
    %25 = vector.multi_reduction <add>, %24, %cst_5 [0] : vector<32x64xf32> to vector<64xf32>
    %26 = vector.shape_cast %25 : vector<64xf32> to vector<1x64xf32>
    %cst_6 = arith.constant 3.125000e-02 : f32
    %27 = vector.broadcast %cst_6 : f32 to vector<1x64xf32>
    %28 = arith.mulf %26, %27 : vector<1x64xf32>
    %29 = vector.extract_strided_slice %28 {offsets = [0, 0], sizes = [1, 32], strides = [1, 1]} : vector<1x64xf32> to vector<1x32xf32>
    %30 = vector.extract_strided_slice %28 {offsets = [0, 32], sizes = [1, 32], strides = [1, 1]} : vector<1x64xf32> to vector<1x32xf32>
    %31 = arith.mulf %29, %29 : vector<1x32xf32>
    %32 = arith.subf %30, %31 : vector<1x32xf32>
    %33 = vector.broadcast %29 : vector<1x32xf32> to vector<32x32xf32>
    %34 = arith.subf %22, %33 : vector<32x32xf32>
    %cst_7 = arith.constant 9.99999974E-6 : f32
    %35 = vector.broadcast %cst_7 : f32 to vector<1x32xf32>
    %36 = arith.addf %32, %35 : vector<1x32xf32>
    %37 = math.rsqrt %36 : vector<1x32xf32>
    %38 = vector.broadcast %37 : vector<1x32xf32> to vector<32x32xf32>
    %39 = arith.mulf %34, %38 : vector<32x32xf32>
    %40 = vector.broadcast %13 : vector<1x32xf32> to vector<32x32xf32>
    %41 = arith.mulf %39, %40 : vector<32x32xf32>
    %42 = vector.broadcast %14 : vector<1x32xf32> to vector<32x32xf32>
    %43 = arith.addf %41, %42 : vector<32x32xf32>
    %44 = arith.truncf %43 : vector<32x32xf32> to vector<32x32xbf16>
    %45 = vector.extract_strided_slice %0 {offsets = [35, 0], sizes = [1, 32], strides = [1, 1]} : vector<48x128xf32> to vector<1x32xf32>
    %46 = vector.extract_strided_slice %0 {offsets = [36, 0], sizes = [1, 32], strides = [1, 1]} : vector<48x128xf32> to vector<1x32xf32>
    %47 = vector.extract_strided_slice %0 {offsets = [37, 0], sizes = [1, 32], strides = [1, 1]} : vector<48x128xf32> to vector<1x32xf32>
    %cst_8 = arith.constant dense<0.000000e+00> : vector<32x32xf32>
    %48 = tpu.matmul %3, %44, %cst_8 {dimension_numbers = #tpu.dot_dimension_numbers<[1], [0], [0], [1], [0, 0, 1, 1], [], []>} : vector<32x32xbf16>, vector<32x32xbf16>, vector<32x32xf32> -> vector<32x32xf32>
    %49 = arith.truncf %48 : vector<32x32xf32> to vector<32x32xbf16>
    %50 = tpu.concatenate %49, %44 in 1 : vector<32x32xbf16>, vector<32x32xbf16> -> vector<32x64xbf16>
    %cst_9 = arith.constant dense<0.000000e+00> : vector<32x32xf32>
    %51 = tpu.matmul %50, %7, %cst_9 {dimension_numbers = #tpu.dot_dimension_numbers<[1], [0], [0], [1], [0, 0, 1, 1], [], []>} : vector<32x64xbf16>, vector<64x32xbf16>, vector<32x32xf32> -> vector<32x32xf32>
    %52 = vector.broadcast %45 : vector<1x32xf32> to vector<32x32xf32>
    %53 = arith.addf %51, %52 : vector<32x32xf32>
    %cst_10 = arith.constant 0.000000e+00 : f32
    %54 = vector.broadcast %cst_10 : f32 to vector<32x32xf32>
    %55 = arith.maximumf %53, %54 : vector<32x32xf32>
    %56 = arith.mulf %55, %55 : vector<32x32xf32>
    %57 = tpu.concatenate %55, %56 in 1 : vector<32x32xf32>, vector<32x32xf32> -> vector<32x64xf32>
    %cst_11 = arith.constant dense<0.000000e+00> : vector<64xf32>
    %58 = vector.multi_reduction <add>, %57, %cst_11 [0] : vector<32x64xf32> to vector<64xf32>
    %59 = vector.shape_cast %58 : vector<64xf32> to vector<1x64xf32>
    %cst_12 = arith.constant 3.125000e-02 : f32
    %60 = vector.broadcast %cst_12 : f32 to vector<1x64xf32>
    %61 = arith.mulf %59, %60 : vector<1x64xf32>
    %62 = vector.extract_strided_slice %61 {offsets = [0, 0], sizes = [1, 32], strides = [1, 1]} : vector<1x64xf32> to vector<1x32xf32>
    %63 = vector.extract_strided_slice %61 {offsets = [0, 32], sizes = [1, 32], strides = [1, 1]} : vector<1x64xf32> to vector<1x32xf32>
    %64 = arith.mulf %62, %62 : vector<1x32xf32>
    %65 = arith.subf %63, %64 : vector<1x32xf32>
    %66 = vector.broadcast %62 : vector<1x32xf32> to vector<32x32xf32>
    %67 = arith.subf %55, %66 : vector<32x32xf32>
    %cst_13 = arith.constant 9.99999974E-6 : f32
    %68 = vector.broadcast %cst_13 : f32 to vector<1x32xf32>
    %69 = arith.addf %65, %68 : vector<1x32xf32>
    %70 = math.rsqrt %69 : vector<1x32xf32>
    %71 = vector.broadcast %70 : vector<1x32xf32> to vector<32x32xf32>
    %72 = arith.mulf %67, %71 : vector<32x32xf32>
    %73 = vector.broadcast %46 : vector<1x32xf32> to vector<32x32xf32>
    %74 = arith.mulf %72, %73 : vector<32x32xf32>
    %75 = vector.broadcast %47 : vector<1x32xf32> to vector<32x32xf32>
    %76 = arith.addf %74, %75 : vector<32x32xf32>
    %77 = arith.truncf %76 : vector<32x32xf32> to vector<32x32xbf16>
    %78 = vector.extract_strided_slice %0 {offsets = [38, 0], sizes = [1, 32], strides = [1, 1]} : vector<48x128xf32> to vector<1x32xf32>
    %79 = vector.extract_strided_slice %0 {offsets = [39, 0], sizes = [1, 32], strides = [1, 1]} : vector<48x128xf32> to vector<1x32xf32>
    %80 = vector.extract_strided_slice %0 {offsets = [40, 0], sizes = [1, 32], strides = [1, 1]} : vector<48x128xf32> to vector<1x32xf32>
    %cst_14 = arith.constant dense<0.000000e+00> : vector<32x32xf32>
    %81 = tpu.matmul %3, %77, %cst_14 {dimension_numbers = #tpu.dot_dimension_numbers<[1], [0], [0], [1], [0, 0, 1, 1], [], []>} : vector<32x32xbf16>, vector<32x32xbf16>, vector<32x32xf32> -> vector<32x32xf32>
    %82 = arith.truncf %81 : vector<32x32xf32> to vector<32x32xbf16>
    %83 = tpu.concatenate %82, %77 in 1 : vector<32x32xbf16>, vector<32x32xbf16> -> vector<32x64xbf16>
    %cst_15 = arith.constant dense<0.000000e+00> : vector<32x32xf32>
    %84 = tpu.matmul %83, %8, %cst_15 {dimension_numbers = #tpu.dot_dimension_numbers<[1], [0], [0], [1], [0, 0, 1, 1], [], []>} : vector<32x64xbf16>, vector<64x32xbf16>, vector<32x32xf32> -> vector<32x32xf32>
    %85 = vector.broadcast %78 : vector<1x32xf32> to vector<32x32xf32>
    %86 = arith.addf %84, %85 : vector<32x32xf32>
    %cst_16 = arith.constant 0.000000e+00 : f32
    %87 = vector.broadcast %cst_16 : f32 to vector<32x32xf32>
    %88 = arith.maximumf %86, %87 : vector<32x32xf32>
    %89 = arith.mulf %88, %88 : vector<32x32xf32>
    %90 = tpu.concatenate %88, %89 in 1 : vector<32x32xf32>, vector<32x32xf32> -> vector<32x64xf32>
    %cst_17 = arith.constant dense<0.000000e+00> : vector<64xf32>
    %91 = vector.multi_reduction <add>, %90, %cst_17 [0] : vector<32x64xf32> to vector<64xf32>
    %92 = vector.shape_cast %91 : vector<64xf32> to vector<1x64xf32>
    %cst_18 = arith.constant 3.125000e-02 : f32
    %93 = vector.broadcast %cst_18 : f32 to vector<1x64xf32>
    %94 = arith.mulf %92, %93 : vector<1x64xf32>
    %95 = vector.extract_strided_slice %94 {offsets = [0, 0], sizes = [1, 32], strides = [1, 1]} : vector<1x64xf32> to vector<1x32xf32>
    %96 = vector.extract_strided_slice %94 {offsets = [0, 32], sizes = [1, 32], strides = [1, 1]} : vector<1x64xf32> to vector<1x32xf32>
    %97 = arith.mulf %95, %95 : vector<1x32xf32>
    %98 = arith.subf %96, %97 : vector<1x32xf32>
    %99 = vector.broadcast %95 : vector<1x32xf32> to vector<32x32xf32>
    %100 = arith.subf %88, %99 : vector<32x32xf32>
    %cst_19 = arith.constant 9.99999974E-6 : f32
    %101 = vector.broadcast %cst_19 : f32 to vector<1x32xf32>
    %102 = arith.addf %98, %101 : vector<1x32xf32>
    %103 = math.rsqrt %102 : vector<1x32xf32>
    %104 = vector.broadcast %103 : vector<1x32xf32> to vector<32x32xf32>
    %105 = arith.mulf %100, %104 : vector<32x32xf32>
    %106 = vector.broadcast %79 : vector<1x32xf32> to vector<32x32xf32>
    %107 = arith.mulf %105, %106 : vector<32x32xf32>
    %108 = vector.broadcast %80 : vector<1x32xf32> to vector<32x32xf32>
    %109 = arith.addf %107, %108 : vector<32x32xf32>
    %110 = arith.truncf %109 : vector<32x32xf32> to vector<32x32xbf16>
    %111 = tpu.concatenate %44, %77, %110 in 1 : vector<32x32xbf16>, vector<32x32xbf16>, vector<32x32xbf16> -> vector<32x96xbf16>
    %cst_20 = arith.constant dense<0.000000e+00> : vector<32x32xf32>
    %112 = tpu.matmul %111, %11, %cst_20 {dimension_numbers = #tpu.dot_dimension_numbers<[1], [0], [0], [1], [0, 0, 1, 1], [], []>} : vector<32x96xbf16>, vector<96x32xbf16>, vector<32x32xf32> -> vector<32x32xf32>
    %113 = vector.extract_strided_slice %0 {offsets = [41, 0], sizes = [1, 32], strides = [1, 1]} : vector<48x128xf32> to vector<1x32xf32>
    %114 = vector.broadcast %113 : vector<1x32xf32> to vector<32x32xf32>
    %115 = arith.addf %112, %114 : vector<32x32xf32>
    %cst_21 = arith.constant 0.000000e+00 : f32
    %116 = vector.broadcast %cst_21 : f32 to vector<32x32xf32>
    %117 = arith.maximumf %115, %116 : vector<32x32xf32>
    %118 = vector.extract_strided_slice %117 {offsets = [0, 0], sizes = [8, 32], strides = [1, 1]} : vector<32x32xf32> to vector<8x32xf32>
    %119 = vector.extract_strided_slice %117 {offsets = [8, 0], sizes = [8, 32], strides = [1, 1]} : vector<32x32xf32> to vector<8x32xf32>
    %120 = vector.extract_strided_slice %117 {offsets = [16, 0], sizes = [8, 32], strides = [1, 1]} : vector<32x32xf32> to vector<8x32xf32>
    %121 = vector.extract_strided_slice %117 {offsets = [24, 0], sizes = [8, 32], strides = [1, 1]} : vector<32x32xf32> to vector<8x32xf32>
    %122 = tpu.concatenate %118, %119, %120, %121 in 1 : vector<8x32xf32>, vector<8x32xf32>, vector<8x32xf32>, vector<8x32xf32> -> vector<8x128xf32>
    %c0_22 = arith.constant 0 : index
    %c0_23 = arith.constant 0 : index
    %123 = vector.load %arg2[%c0_22, %c0_23] : memref<8x128xf32, #tpu.memory_space<vmem>>, vector<8x128xf32>
    tpu.vector_store %arg2[%c0_22, %c0_23], %122 {strides = array<i32>} : memref<8x128xf32, #tpu.memory_space<vmem>>, vector<8x128xf32>,
    return
  }
}

</mosaic_0001>

<llo_original>
// kernel: gnn_forward.1
$region0: #{gnn_forward.1}
  #allocation0 [shape = 'u32[]', space=smem, size = 0x4, offset = 0x4, fixed_abs, tag = 'smem constant byte address 0x4 - core index']
  #allocation1 [shape = 'u32[72,128]{1,0:T(1,128)}', space=vmem, size = 0x9000, scoped, tag = 'internal scratch']
  %s0 = inlined_call_operand.vmem [shape: f32[48,128], index: 0, kind: input, shape index: {}]
  %s1 = inlined_call_operand.vmem [shape: bf16[64,128], index: 1, kind: input, shape index: {}]
  %s2 = inlined_call_operand.vmem [shape: f32[8,128], index: 2, kind: output, shape index: {}]
  %s3 = sld [smem:[#allocation0]]
  $region18: #{gnn_forward.1} parent=0
    _
  %s5 = ssub.s32 1, %s3
  %s6 = scalar_select 0, %s5, %s3
  // Predicated region
  $region2: #{gnn_forward.1} parent=0 // pred_check
    _
  $region3: #{gnn_forward.1} parent=0 // pred_check_branch
    %8 = sbr.rel (0) target = $region5
  $region4: #{gnn_forward.1} parent=0 // pred_region
    _
  $region5: #{gnn_forward.1} parent=0 // pred_fallthru
    _
  // Predicated region
  $region6: #{gnn_forward.1} parent=0 // pred_check
    _
  $region7: #{gnn_forward.1} parent=0 // pred_check_branch
    %10 = sbr.rel (0) target = $region9
  $region8: #{gnn_forward.1} parent=0 // pred_region
    _
  $region9: #{gnn_forward.1} parent=0 // pred_fallthru
    _
  %v12 = vld [vmem:[%s0] sm:$0xff]
  %v13 = vld [vmem:[%s0 + $0x8] sm:$0xff]
  %v14 = vld [vmem:[%s0 + $0x10] sm:$0xff]
  %v15 = vld [vmem:[%s0 + $0x18] sm:$0xff]
  %v16 = vld [vmem:[%s0 + $0x20] sm:$0xff]
  %v17 = vld [vmem:[%s0 + $0x28] sm:$0xff]
  %v18 = vld [vmem:[%s1] sm:$0xf]
  %v19 = vld [vmem:[%s1 + $0x4] sm:$0xf]
  %v20 = vld [vmem:[%s1 + $0x8] sm:$0xf]
  %v21 = vld [vmem:[%s1 + $0xc] sm:$0xf]
  %v22 = vld [vmem:[%s1 + $0x10] sm:$0xf]
  %v23 = vld [vmem:[%s1 + $0x14] sm:$0xf]
  %v24 = vld [vmem:[%s1 + $0x18] sm:$0xf]
  %v25 = vld [vmem:[%s1 + $0x1c] sm:$0xf]
  %v26 = vpack.c.bf16 %v13, %v12
  %v27 = vpack.c.bf16 %v15, %v14
  %v28 = vpack.c.bf16 %v12, %v12
  %v29 = vpack.c.bf16 %v13, %v13
  %v30 = vpack.c.bf16 %v14, %v14
  %v31 = vpack.c.bf16 %v15, %v15
  %v36 = vunpack.c.l.b16 %v22
  %v37 = vunpack.c.l.b16 %v23
  %v38 = vunpack.c.l.b16 %v24
  %v39 = vunpack.c.l.b16 %v25
  %v40 = vpack.c.b16 %v37, %v36
  %v41 = vpack.c.b16 %v39, %v38
  %v46 = vunpack.c.l.b16 %v18
  %v47 = vunpack.c.l.b16 %v19
  %v48 = vunpack.c.l.b16 %v20
  %v49 = vunpack.c.l.b16 %v21
  %v50 = vpack.c.b16 %v47, %v46
  %v51 = vpack.c.b16 %v49, %v48
  %52 = vrot.lane.b32.xlu0 %v50, 96
  %v53 = vpop.permute.xlu0 %52
  %54 = vrot.lane.b32.xlu0 %v51, 96
  %v55 = vpop.permute.xlu0 %54
  %56 = vrot.lane.b32.xlu0 %v40, 96
  %v57 = vpop.permute.xlu0 %56
  %58 = vrot.lane.b32.xlu0 %v41, 96
  %v59 = vpop.permute.xlu0 %58
  %v64 = vunpack.c.l.b16 %v28
  %v65 = vunpack.c.l.b16 %v29
  %v66 = vunpack.c.l.b16 %v30
  %v67 = vunpack.c.l.b16 %v31
  %v68 = vpack.c.b16 %v65, %v64
  %v69 = vpack.c.b16 %v67, %v66
  %70 = vrot.lane.b32.xlu0 %v68, 96
  %v71 = vpop.permute.xlu0 %70
  %72 = vrot.lane.b32.xlu0 %v69, 96
  %v73 = vpop.permute.xlu0 %72
  %vm76 = vcmask 261120
  %v78 = vsel %vm76, %v26, 0
  %v81 = vsel %vm76, %v27, 0
  %83 = vmatpush.bf16.msra.mxu0 0
  %84 = vmatpush.bf16.msra.mxu0 0
  %85 = vmatpush.bf16.msra.mxu0 0
  %86 = vmatpush.bf16.msra.mxu0 0
  %87 = vmatpush.bf16.msra.mxu0 0
  %88 = vmatpush.bf16.msra.mxu0 0
  %89 = vmatpush.bf16.msra.mxu0 %v73
  %90 = vmatpush.bf16.msra.mxu0 %v71
  %91 = vmatmul.bf16.gmra.mxu0 %v78
  %v92 = vpop.f32.mrf.mxu0
  %v93 = vadd.f32 0.0, %v92
  %v94 = vpop.f32.mrf.mxu0
  %v95 = vadd.f32 0.0, %v94
  %96 = vmatmul.bf16.gmra.mxu0 %v81
  %v97 = vpop.f32.mrf.mxu0
  %v98 = vadd.f32 0.0, %v97
  %v99 = vpop.f32.mrf.mxu0
  %v100 = vadd.f32 0.0, %v99
  %101 = vdwg.mxu0
  %v102 = vpack.c.bf16 %v93, %v93
  %v103 = vpack.c.bf16 %v95, %v95
  %v104 = vpack.c.bf16 %v98, %v98
  %v105 = vpack.c.bf16 %v100, %v100
  %v110 = vunpack.c.l.b16 %v102
  %v111 = vunpack.c.l.b16 %v103
  %v112 = vunpack.c.l.b16 %v104
  %v113 = vunpack.c.l.b16 %v105
  %v114 = vpack.c.b16 %v111, %v110
  %v115 = vpack.c.b16 %v113, %v112
  %116 = vrot.lane.b32.xlu0 %v68, 112
  %v117 = vpop.permute.xlu0 %116
  %118 = vrot.lane.b32.xlu0 %v69, 112
  %v119 = vpop.permute.xlu0 %118
  %vm120 = vcmask 130048
  %v123 = vsel %vm120, %v114, %v117
  %v126 = vsel %vm120, %v115, %v119
  %v127 = vperm.slane %v16, 0
  %128 = vrot.lane.b32.xlu0 %v50, 64
  %v129 = vpop.permute.xlu0 %128
  %130 = vrot.lane.b32.xlu0 %v51, 64
  %v131 = vpop.permute.xlu0 %130
  %v134 = vsel %vm76, %v123, 0
  %v136 = vsel %vm76, %v126, 0
  %138 = vmatpush.bf16.msra.mxu0 0
  %139 = vmatpush.bf16.msra.mxu0 0
  %140 = vmatpush.bf16.msra.mxu0 0
  %141 = vmatpush.bf16.msra.mxu0 0
  %142 = vmatpush.bf16.msra.mxu0 0
  %143 = vmatpush.bf16.msra.mxu0 0
  %144 = vmatpush.bf16.msra.mxu0 %v131
  %145 = vmatpush.bf16.msra.mxu0 %v129
  %146 = vmatmul.bf16.gmra.mxu0 %v134
  %v147 = vpop.f32.mrf.mxu0
  %v148 = vadd.f32 %v127, %v147
  %v149 = vpop.f32.mrf.mxu0
  %v150 = vadd.f32 %v127, %v149
  %151 = vmatmul.bf16.gmra.mxu0 %v136
  %v152 = vpop.f32.mrf.mxu0
  %v153 = vadd.f32 %v127, %v152
  %v154 = vpop.f32.mrf.mxu0
  %v155 = vadd.f32 %v127, %v154
  %156 = vdwg.mxu0
  %v157 = vmax.f32 %v148, 0.0
  %v158 = vmax.f32 %v150, 0.0
  %v159 = vmax.f32 %v153, 0.0
  %v160 = vmax.f32 %v155, 0.0
  %v161 = vmul.f32 %v157, %v157
  %v162 = vmul.f32 %v158, %v158
  %v163 = vmul.f32 %v159, %v159
  %v164 = vmul.f32 %v160, %v160
  %169 = vrot.lane.b32.xlu0 %v161, 32
  %v170 = vpop.permute.xlu0 %169
  %171 = vrot.lane.b32.xlu0 %v162, 32
  %v172 = vpop.permute.xlu0 %171
  %173 = vrot.lane.b32.xlu0 %v163, 32
  %v174 = vpop.permute.xlu0 %173
  %175 = vrot.lane.b32.xlu0 %v164, 32
  %v176 = vpop.permute.xlu0 %175
  %v181 = vsel %vm76, %v157, %v170
  %v182 = vsel %vm76, %v158, %v172
  %v183 = vsel %vm76, %v159, %v174
  %v184 = vsel %vm76, %v160, %v176
  %vm185 = vcmask 523264
  %v186 = vsel %vm185, %v181, 0.0
  %v187 = vsel %vm185, %v182, 0.0
  %v188 = vadd.f32 %v186, %v187
  %v189 = vsel %vm185, %v183, 0.0
  %v190 = vadd.f32 %v188, %v189
  %v191 = vsel %vm185, %v184, 0.0
  %v192 = vadd.f32 %v190, %v191
  %v193 = vrot.slane %v192, 4
  %v194 = vadd.f32 %v192, %v193
  %v195 = vrot.slane %v194, 2
  %v196 = vadd.f32 %v194, %v195
  %v197 = vrot.slane %v196, 1
  %v198 = vadd.f32 %v196, %v197
  %v199 = vmul.f32 %v198, 0.03125
  %v200 = vmul.f32 %v199, %v199
  %202 = vrot.lane.b32.xlu0 %v200, 32
  %v203 = vpop.permute.xlu0 %202
  %v205 = vsub.f32 %v199, %v203
  %v206 = vsub.f32 %v157, %v199
  %v207 = vsub.f32 %v158, %v199
  %v208 = vsub.f32 %v159, %v199
  %v209 = vsub.f32 %v160, %v199
  %v210 = vadd.f32 %v205, 1e-05
  %v211 = vrsqrt.pop %v210
  %v212 = vmul.f32 %v211, %v210
  %v213 = vmul.f32 %v212, %v211
  %v214 = vmul.f32 0.5, %v213
  %v215 = vsub.f32 1.5, %v214
  %v216 = vmul.f32 %v211, %v215
  %vm217 = vweird.f32 %v210
  %vm218 = vweird.f32 %v211
  %vm219 = vmor %vm217, %vm218
  %v220 = vsel %vm219, %v211, %v216
  %v221 = vperm.slane %v220, 0
  %223 = vrot.lane.b32.xlu0 %v221, 96
  %v224 = vpop.permute.xlu0 %223
  %v226 = vmul.f32 %v206, %v224
  %v227 = vmul.f32 %v207, %v224
  %v228 = vmul.f32 %v208, %v224
  %v229 = vmul.f32 %v209, %v224
  %v230 = vperm.slane %v16, 1
  %v231 = vmul.f32 %v226, %v230
  %v232 = vmul.f32 %v227, %v230
  %v233 = vmul.f32 %v228, %v230
  %v234 = vmul.f32 %v229, %v230
  %v235 = vperm.slane %v16, 2
  %v236 = vadd.f32 %v231, %v235
  %v237 = vadd.f32 %v232, %v235
  %v238 = vadd.f32 %v233, %v235
  %v239 = vadd.f32 %v234, %v235
  %v240 = vpack.c.bf16 %v236, %v236
  %v241 = vpack.c.bf16 %v237, %v237
  %v242 = vpack.c.bf16 %v238, %v238
  %v243 = vpack.c.bf16 %v239, %v239
  %v248 = vunpack.c.l.b16 %v240
  %v249 = vunpack.c.l.b16 %v241
  %v250 = vunpack.c.l.b16 %v242
  %v251 = vunpack.c.l.b16 %v243
  %v252 = vpack.c.b16 %v249, %v248
  %v253 = vpack.c.b16 %v251, %v250
  %256 = vmatpush.bf16.msra.mxu0 0
  %257 = vmatpush.bf16.msra.mxu0 0
  %258 = vmatpush.bf16.msra.mxu0 0
  %259 = vmatpush.bf16.msra.mxu0 0
  %260 = vmatpush.bf16.msra.mxu0 0
  %261 = vmatpush.bf16.msra.mxu0 0
  %262 = vmatpush.bf16.msra.mxu0 %v253
  %263 = vmatpush.bf16.msra.mxu0 %v252
  %264 = vmatmul.bf16.gmra.mxu0 %v78
  %v265 = vpop.f32.mrf.mxu0
  %v266 = vadd.f32 0.0, %v265
  %v267 = vpop.f32.mrf.mxu0
  %v268 = vadd.f32 0.0, %v267
  %269 = vmatmul.bf16.gmra.mxu0 %v81
  %v270 = vpop.f32.mrf.mxu0
  %v271 = vadd.f32 0.0, %v270
  %v272 = vpop.f32.mrf.mxu0
  %v273 = vadd.f32 0.0, %v272
  %274 = vdwg.mxu0
  %v275 = vpack.c.bf16 %v266, %v266
  %v276 = vpack.c.bf16 %v268, %v268
  %v277 = vpack.c.bf16 %v271, %v271
  %v278 = vpack.c.bf16 %v273, %v273
  %v283 = vunpack.c.l.b16 %v275
  %v284 = vunpack.c.l.b16 %v276
  %v285 = vunpack.c.l.b16 %v277
  %v286 = vunpack.c.l.b16 %v278
  %v287 = vpack.c.b16 %v284, %v283
  %v288 = vpack.c.b16 %v286, %v285
  %289 = vrot.lane.b32.xlu0 %v252, 32
  %v290 = vpop.permute.xlu0 %289
  %291 = vrot.lane.b32.xlu0 %v253, 32
  %v292 = vpop.permute.xlu0 %291
  %v295 = vsel %vm76, %v287, %v290
  %v298 = vsel %vm76, %v288, %v292
  %v299 = vperm.slane %v16, 3
  %v304 = vsel %vm185, %v295, 0
  %v306 = vsel %vm185, %v298, 0
  %308 = vmatpush.bf16.msra.mxu0 0
  %309 = vmatpush.bf16.msra.mxu0 0
  %310 = vmatpush.bf16.msra.mxu0 0
  %311 = vmatpush.bf16.msra.mxu0 0
  %312 = vmatpush.bf16.msra.mxu0 %v41
  %313 = vmatpush.bf16.msra.mxu0 %v40
  %314 = vmatpush.bf16.msra.mxu0 %v51
  %315 = vmatpush.bf16.msra.mxu0 %v50
  %316 = vmatmul.bf16.gmra.mxu0 %v304
  %v317 = vpop.f32.mrf.mxu0
  %v318 = vadd.f32 %v299, %v317
  %v319 = vpop.f32.mrf.mxu0
  %v320 = vadd.f32 %v299, %v319
  %321 = vmatmul.bf16.gmra.mxu0 %v306
  %v322 = vpop.f32.mrf.mxu0
  %v323 = vadd.f32 %v299, %v322
  %v324 = vpop.f32.mrf.mxu0
  %v325 = vadd.f32 %v299, %v324
  %326 = vdwg.mxu0
  %v327 = vmax.f32 %v318, 0.0
  %v328 = vmax.f32 %v320, 0.0
  %v329 = vmax.f32 %v323, 0.0
  %v330 = vmax.f32 %v325, 0.0
  %v331 = vmul.f32 %v327, %v327
  %v332 = vmul.f32 %v328, %v328
  %v333 = vmul.f32 %v329, %v329
  %v334 = vmul.f32 %v330, %v330
  %339 = vrot.lane.b32.xlu0 %v331, 32
  %v340 = vpop.permute.xlu0 %339
  %341 = vrot.lane.b32.xlu0 %v332, 32
  %v342 = vpop.permute.xlu0 %341
  %343 = vrot.lane.b32.xlu0 %v333, 32
  %v344 = vpop.permute.xlu0 %343
  %345 = vrot.lane.b32.xlu0 %v334, 32
  %v346 = vpop.permute.xlu0 %345
  %v351 = vsel %vm76, %v327, %v340
  %v352 = vsel %vm76, %v328, %v342
  %v353 = vsel %vm76, %v329, %v344
  %v354 = vsel %vm76, %v330, %v346
  %v355 = vsel %vm185, %v351, 0.0
  %v356 = vsel %vm185, %v352, 0.0
  %v357 = vadd.f32 %v355, %v356
  %v358 = vsel %vm185, %v353, 0.0
  %v359 = vadd.f32 %v357, %v358
  %v360 = vsel %vm185, %v354, 0.0
  %v361 = vadd.f32 %v359, %v360
  %v362 = vrot.slane %v361, 4
  %v363 = vadd.f32 %v361, %v362
  %v364 = vrot.slane %v363, 2
  %v365 = vadd.f32 %v363, %v364
  %v366 = vrot.slane %v365, 1
  %v367 = vadd.f32 %v365, %v366
  %v368 = vmul.f32 %v367, 0.03125
  %v369 = vmul.f32 %v368, %v368
  %371 = vrot.lane.b32.xlu0 %v369, 32
  %v372 = vpop.permute.xlu0 %371
  %v374 = vsub.f32 %v368, %v372
  %v375 = vsub.f32 %v327, %v368
  %v376 = vsub.f32 %v328, %v368
  %v377 = vsub.f32 %v329, %v368
  %v378 = vsub.f32 %v330, %v368
  %v379 = vadd.f32 %v374, 1e-05
  %v380 = vrsqrt.pop %v379
  %v381 = vmul.f32 %v380, %v379
  %v382 = vmul.f32 %v381, %v380
  %v383 = vmul.f32 0.5, %v382
  %v384 = vsub.f32 1.5, %v383
  %v385 = vmul.f32 %v380, %v384
  %vm386 = vweird.f32 %v379
  %vm387 = vweird.f32 %v380
  %vm388 = vmor %vm386, %vm387
  %v389 = vsel %vm388, %v380, %v385
  %v390 = vperm.slane %v389, 0
  %392 = vrot.lane.b32.xlu0 %v390, 96
  %v393 = vpop.permute.xlu0 %392
  %v395 = vmul.f32 %v375, %v393
  %v396 = vmul.f32 %v376, %v393
  %v397 = vmul.f32 %v377, %v393
  %v398 = vmul.f32 %v378, %v393
  %v399 = vperm.slane %v16, 4
  %v400 = vmul.f32 %v395, %v399
  %v401 = vmul.f32 %v396, %v399
  %v402 = vmul.f32 %v397, %v399
  %v403 = vmul.f32 %v398, %v399
  %v404 = vperm.slane %v16, 5
  %v405 = vadd.f32 %v400, %v404
  %v406 = vadd.f32 %v401, %v404
  %v407 = vadd.f32 %v402, %v404
  %v408 = vadd.f32 %v403, %v404
  %v409 = vpack.c.bf16 %v405, %v405
  %v410 = vpack.c.bf16 %v406, %v406
  %v411 = vpack.c.bf16 %v407, %v407
  %v412 = vpack.c.bf16 %v408, %v408
  %v417 = vunpack.c.l.b16 %v409
  %v418 = vunpack.c.l.b16 %v410
  %v419 = vunpack.c.l.b16 %v411
  %v420 = vunpack.c.l.b16 %v412
  %v421 = vpack.c.b16 %v418, %v417
  %v422 = vpack.c.b16 %v420, %v419
  %425 = vmatpush.bf16.msra.mxu0 0
  %426 = vmatpush.bf16.msra.mxu0 0
  %427 = vmatpush.bf16.msra.mxu0 0
  %428 = vmatpush.bf16.msra.mxu0 0
  %429 = vmatpush.bf16.msra.mxu0 0
  %430 = vmatpush.bf16.msra.mxu0 0
  %431 = vmatpush.bf16.msra.mxu0 %v422
  %432 = vmatpush.bf16.msra.mxu0 %v421
  %433 = vmatmul.bf16.gmra.mxu0 %v78
  %v434 = vpop.f32.mrf.mxu0
  %v435 = vadd.f32 0.0, %v434
  %v436 = vpop.f32.mrf.mxu0
  %v437 = vadd.f32 0.0, %v436
  %438 = vmatmul.bf16.gmra.mxu0 %v81
  %v439 = vpop.f32.mrf.mxu0
  %v440 = vadd.f32 0.0, %v439
  %v441 = vpop.f32.mrf.mxu0
  %v442 = vadd.f32 0.0, %v441
  %443 = vdwg.mxu0
  %v444 = vpack.c.bf16 %v435, %v435
  %v445 = vpack.c.bf16 %v437, %v437
  %v446 = vpack.c.bf16 %v440, %v440
  %v447 = vpack.c.bf16 %v442, %v442
  %v452 = vunpack.c.l.b16 %v444
  %v453 = vunpack.c.l.b16 %v445
  %v454 = vunpack.c.l.b16 %v446
  %v455 = vunpack.c.l.b16 %v447
  %v456 = vpack.c.b16 %v453, %v452
  %v457 = vpack.c.b16 %v455, %v454
  %458 = vrot.lane.b32.xlu0 %v421, 32
  %v459 = vpop.permute.xlu0 %458
  %460 = vrot.lane.b32.xlu0 %v422, 32
  %v461 = vpop.permute.xlu0 %460
  %v464 = vsel %vm76, %v456, %v459
  %v467 = vsel %vm76, %v457, %v461
  %v468 = vperm.slane %v16, 6
  %v473 = vsel %vm185, %v464, 0
  %v475 = vsel %vm185, %v467, 0
  %477 = vmatpush.bf16.msra.mxu0 0
  %478 = vmatpush.bf16.msra.mxu0 0
  %479 = vmatpush.bf16.msra.mxu0 0
  %480 = vmatpush.bf16.msra.mxu0 0
  %481 = vmatpush.bf16.msra.mxu0 %v59
  %482 = vmatpush.bf16.msra.mxu0 %v57
  %483 = vmatpush.bf16.msra.mxu0 %v55
  %484 = vmatpush.bf16.msra.mxu0 %v53
  %485 = vmatmul.bf16.gmra.mxu0 %v473
  %v486 = vpop.f32.mrf.mxu0
  %v487 = vadd.f32 %v468, %v486
  %v488 = vpop.f32.mrf.mxu0
  %v489 = vadd.f32 %v468, %v488
  %490 = vmatmul.bf16.gmra.mxu0 %v475
  %v491 = vpop.f32.mrf.mxu0
  %v492 = vadd.f32 %v468, %v491
  %v493 = vpop.f32.mrf.mxu0
  %v494 = vadd.f32 %v468, %v493
  %495 = vdwg.mxu0
  %v496 = vmax.f32 %v487, 0.0
  %v497 = vmax.f32 %v489, 0.0
  %v498 = vmax.f32 %v492, 0.0
  %v499 = vmax.f32 %v494, 0.0
  %v500 = vmul.f32 %v496, %v496
  %v501 = vmul.f32 %v497, %v497
  %v502 = vmul.f32 %v498, %v498
  %v503 = vmul.f32 %v499, %v499
  %508 = vrot.lane.b32.xlu0 %v500, 32
  %v509 = vpop.permute.xlu0 %508
  %510 = vrot.lane.b32.xlu0 %v501, 32
  %v511 = vpop.permute.xlu0 %510
  %512 = vrot.lane.b32.xlu0 %v502, 32
  %v513 = vpop.permute.xlu0 %512
  %514 = vrot.lane.b32.xlu0 %v503, 32
  %v515 = vpop.permute.xlu0 %514
  %v520 = vsel %vm76, %v496, %v509
  %v521 = vsel %vm76, %v497, %v511
  %v522 = vsel %vm76, %v498, %v513
  %v523 = vsel %vm76, %v499, %v515
  %v524 = vsel %vm185, %v520, 0.0
  %v525 = vsel %vm185, %v521, 0.0
  %v526 = vadd.f32 %v524, %v525
  %v527 = vsel %vm185, %v522, 0.0
  %v528 = vadd.f32 %v526, %v527
  %v529 = vsel %vm185, %v523, 0.0
  %v530 = vadd.f32 %v528, %v529
  %v531 = vrot.slane %v530, 4
  %v532 = vadd.f32 %v530, %v531
  %v533 = vrot.slane %v532, 2
  %v534 = vadd.f32 %v532, %v533
  %v535 = vrot.slane %v534, 1
  %v536 = vadd.f32 %v534, %v535
  %v537 = vmul.f32 %v536, 0.03125
  %v538 = vmul.f32 %v537, %v537
  %540 = vrot.lane.b32.xlu0 %v538, 32
  %v541 = vpop.permute.xlu0 %540
  %v543 = vsub.f32 %v537, %v541
  %v544 = vsub.f32 %v496, %v537
  %v545 = vsub.f32 %v497, %v537
  %v546 = vsub.f32 %v498, %v537
  %v547 = vsub.f32 %v499, %v537
  %v548 = vadd.f32 %v543, 1e-05
  %v549 = vrsqrt.pop %v548
  %v550 = vmul.f32 %v549, %v548
  %v551 = vmul.f32 %v550, %v549
  %v552 = vmul.f32 0.5, %v551
  %v553 = vsub.f32 1.5, %v552
  %v554 = vmul.f32 %v549, %v553
  %vm555 = vweird.f32 %v548
  %vm556 = vweird.f32 %v549
  %vm557 = vmor %vm555, %vm556
  %v558 = vsel %vm557, %v549, %v554
  %v559 = vperm.slane %v558, 0
  %561 = vrot.lane.b32.xlu0 %v559, 96
  %v562 = vpop.permute.xlu0 %561
  %v564 = vmul.f32 %v544, %v562
  %v565 = vmul.f32 %v545, %v562
  %v566 = vmul.f32 %v546, %v562
  %v567 = vmul.f32 %v547, %v562
  %v568 = vperm.slane %v16, 7
  %v569 = vmul.f32 %v564, %v568
  %v570 = vmul.f32 %v565, %v568
  %v571 = vmul.f32 %v566, %v568
  %v572 = vmul.f32 %v567, %v568
  %v573 = vperm.slane %v17, 0
  %v574 = vadd.f32 %v569, %v573
  %v575 = vadd.f32 %v570, %v573
  %v576 = vadd.f32 %v571, %v573
  %v577 = vadd.f32 %v572, %v573
  %v578 = vpack.c.bf16 %v574, %v574
  %v579 = vpack.c.bf16 %v575, %v575
  %v580 = vpack.c.bf16 %v576, %v576
  %v581 = vpack.c.bf16 %v577, %v577
  %v586 = vunpack.c.l.b16 %v578
  %v587 = vunpack.c.l.b16 %v579
  %v588 = vunpack.c.l.b16 %v580
  %v589 = vunpack.c.l.b16 %v581
  %v590 = vpack.c.b16 %v587, %v586
  %v591 = vpack.c.b16 %v589, %v588
  %592 = vrot.lane.b32.xlu0 %v590, 64
  %v593 = vpop.permute.xlu0 %592
  %594 = vrot.lane.b32.xlu0 %v591, 64
  %v595 = vpop.permute.xlu0 %594
  %v597 = vsel %vm76, %v252, %v459
  %v599 = vsel %vm76, %v253, %v461
  %v601 = vsel %vm185, %v597, %v593
  %v603 = vsel %vm185, %v599, %v595
  %v604 = vperm.slane %v17, 1
  %605 = vrot.lane.b32.xlu0 %v40, 64
  %v606 = vpop.permute.xlu0 %605
  %607 = vrot.lane.b32.xlu0 %v41, 64
  %v608 = vpop.permute.xlu0 %607
  %609 = vrot.lane.b32.xlu0 %v53, 64
  %v610 = vpop.permute.xlu0 %609
  %611 = vrot.lane.b32.xlu0 %v55, 64
  %v612 = vpop.permute.xlu0 %611
  %613 = vrot.lane.b32.xlu0 %v57, 64
  %v614 = vpop.permute.xlu0 %613
  %615 = vrot.lane.b32.xlu0 %v59, 64
  %v616 = vpop.permute.xlu0 %615
  %vm623 = vcmask 785408
  %v624 = vsel %vm623, %v601, 0
  %v626 = vsel %vm623, %v603, 0
  %628 = vmatpush.bf16.msra.mxu0 0
  %629 = vmatpush.bf16.msra.mxu0 0
  %630 = vmatpush.bf16.msra.mxu0 %v616
  %631 = vmatpush.bf16.msra.mxu0 %v614
  %632 = vmatpush.bf16.msra.mxu0 %v612
  %633 = vmatpush.bf16.msra.mxu0 %v610
  %634 = vmatpush.bf16.msra.mxu0 %v608
  %635 = vmatpush.bf16.msra.mxu0 %v606
  %636 = vmatmul.bf16.gmra.mxu0 %v624
  %v637 = vpop.f32.mrf.mxu0
  %v638 = vadd.f32 %v604, %v637
  %v639 = vpop.f32.mrf.mxu0
  %v640 = vadd.f32 %v604, %v639
  %641 = vmatmul.bf16.gmra.mxu0 %v626
  %v642 = vpop.f32.mrf.mxu0
  %v643 = vadd.f32 %v604, %v642
  %v644 = vpop.f32.mrf.mxu0
  %v645 = vadd.f32 %v604, %v644
  %646 = vdwg.mxu0
  %v647 = vmax.f32 %v638, 0.0
  %v648 = vmax.f32 %v640, 0.0
  %v649 = vmax.f32 %v643, 0.0
  %v650 = vmax.f32 %v645, 0.0
  %652 = vrot.lane.b32.xlu0 %v648, 32
  %v653 = vpop.permute.xlu0 %652
  %656 = vrot.lane.b32.xlu0 %v649, 64
  %v657 = vpop.permute.xlu0 %656
  %660 = vrot.lane.b32.xlu0 %v650, 96
  %v661 = vpop.permute.xlu0 %660
  %v663 = vsel %vm76, %v647, %v653
  %v664 = vsel %vm185, %v663, %v657
  %v665 = vsel %vm623, %v664, %v661
  %666 = vst [vmem:[%s2] sm:$0xff] %v665
  // Predicated region
  $region10: #{gnn_forward.1} parent=0 // pred_check
    _
  $region11: #{gnn_forward.1} parent=0 // pred_check_branch
    %668 = sbr.rel (0) target = $region13
  $region12: #{gnn_forward.1} parent=0 // pred_region
    _
  $region13: #{gnn_forward.1} parent=0 // pred_fallthru
    _
  // Predicated region
  $region14: #{gnn_forward.1} parent=0 // pred_check
    _
  $region15: #{gnn_forward.1} parent=0 // pred_check_branch
    %670 = sbr.rel (0) target = $region17
  $region16: #{gnn_forward.1} parent=0 // pred_region
    _
  $region17: #{gnn_forward.1} parent=0 // pred_fallthru
    _

</llo_original>
